<compile_context>
chip_gen: v5e
topology: v5e:2x2
jax: 0.10.0
libtpu: 0.0.40
codegen_flags: <defaults>
</compile_context>

<pallas_src>
import functools

import jax
import jax.numpy as jnp
from jax.experimental import pallas as pl
from jax.experimental.pallas import tpu as pltpu


def _node_encoder_kernel(x_ref, emb_ref, out_ref, *, relu_feat):
    # x_ref  : [tile, 2]         int32
    # emb_ref: [num_types, D1]   float32  (rows already relu'd if use_relu; last col zeros)
    # out_ref: [tile, D1]
    # Note: on the partial last grid step, rows past N hold undefined data; they only
    # feed compares/selects and their output rows are never written back (Pallas clips).

    # Keep 2-D column views (avoid rank-reducing slice -> cross-lane relayout).
    idx = x_ref[:, 0:1]                               # [tile, 1] int32 node-type
    feat = x_ref[:, 1:2].astype(jnp.float32)          # [tile, 1] num_inverted_predecessors
    if relu_feat:
        feat = jnp.maximum(feat, jnp.float32(0.0))    # relu only on the appended column

    num_types, d1 = emb_ref.shape

    # Embedding gather as a pure-VPU select over the 3 table rows:
    # two compares + two selects per vreg, no MXU push / result-FIFO drain.
    row0 = emb_ref[0:1, :]                            # [1, d1]
    row1 = emb_ref[1:2, :]                            # [1, d1]
    row2 = emb_ref[2:3, :]                            # [1, d1]
    emb = jnp.where(idx == 0, row0,
                    jnp.where(idx == 1, row1, row2))  # [tile, d1]

    # "Concat" of the extra scalar feature: write it into the last lane
    # (that lane of the table is zero-padded, so a select is exact).
    lane_iota = jax.lax.broadcasted_iota(jnp.int32, (1, d1), 1)   # [1, d1]
    out = jnp.where(lane_iota == d1 - 1, feat, emb)               # [tile, d1]

    out_ref[...] = out.astype(out_ref.dtype)


def _round_up(a, b):
    return ((a + b - 1) // b) * b


def _tensorcores_per_chip():
    # Used only to decide whether splitting a small graph into 2 grid steps buys
    # anything (it does only on multi-TC chips, e.g. v7x).  Fail safe to 1.
    try:
        return max(1, int(getattr(jax.devices()[0], "num_cores", 1)))
    except Exception:  # pragma: no cover - defensive
        return 1


def node_encoder_forward(x, emb_weight, *, use_relu=True, tile_n=4096,
                         out_dtype=jnp.float32):
    """x: [N, 2] int, emb_weight: [num_types, emb_dim] float32 ->
       [N, emb_dim + 1] out_dtype (== relu(concat(embed(x[:,0]), x[:,1:2])))."""
    n, _ = x.shape
    num_types, emb_dim = emb_weight.shape
    d1 = emb_dim + 1

    # Fold the ReLU of the embedding half into the (tiny) table; pad a zero column
    # so the kernel output is a single slab of width emb_dim + 1.
    table = jnp.maximum(emb_weight, 0.0) if use_relu else emb_weight
    emb_padded = jnp.pad(table.astype(jnp.float32), ((0, 0), (0, 1)))   # [num_types, d1]

    # Tile selection: large by default (amortize ~0.35 us per-grid-step overhead),
    # sublane-aligned (multiple of 8).  For small graphs, only split into >=2 grid
    # steps when the chip actually has >=2 TensorCores to shard them onto.
    if n <= tile_n:
        if _tensorcores_per_chip() >= 2 and n > 8:
            tile = max(8, _round_up(pl.cdiv(n, 2), 8))
        else:
            tile = min(_round_up(max(n, 1), 8), tile_n)
    else:
        tile = tile_n

    grid = (pl.cdiv(n, tile),)   # ragged N handled by Pallas partial-block clipping

    kernel = functools.partial(_node_encoder_kernel, relu_feat=use_relu)

    out = pl.pallas_call(
        kernel,
        out_shape=jax.ShapeDtypeStruct((n, d1), out_dtype),
        grid_spec=pltpu.PrefetchScalarGridSpec(
            num_scalar_prefetch=0,
            grid=grid,
            in_specs=[
                pl.BlockSpec((tile, 2), lambda i: (i, 0)),        # node features
                pl.BlockSpec((num_types, d1), lambda i: (0, 0)),  # embedding table (resident)
            ],
            out_specs=pl.BlockSpec((tile, d1), lambda i: (i, 0)),
        ),
        compiler_params=pltpu.CompilerParams(
            dimension_semantics=("parallel",)),
    )(x.astype(jnp.int32), emb_padded)

    return out


def _reference_forward(x, emb_weight, use_relu=True):
    emb = emb_weight[x[:, 0]]                                    # [N, emb_dim]
    feat = x[:, 1].astype(jnp.float32)[:, None]                  # [N, 1]
    out = jnp.concatenate([emb, feat], axis=1)
    return jnp.maximum(out, 0.0) if use_relu else out


def _xavier_uniform(key, shape):
    fan_in, fan_out = shape[0], shape[1]
    limit = jnp.sqrt(6.0 / (fan_in + fan_out))
    return jax.random.uniform(key, shape, jnp.float32, -limit, limit)


if __name__ == "__main__":
    key = jax.random.PRNGKey(0)
    k_w, k_type, k_inv = jax.random.split(key, 3)

    emb_dim = 32           # hidden size of the node-type embedding
    num_nodes = 130        # deliberately not a multiple of the tile -> exercises
                           # the partial-last-block (ragged N) path

    # Deterministic parameter init (xavier_uniform, as in the module __init__).
    emb_weight = _xavier_uniform(k_w, (3, emb_dim))

    # Node features: column 0 = node_type in {0,1,2},
    #                column 1 = num_inverted_predecessors in {0,1,2}.
    node_type = jax.random.randint(k_type, (num_nodes, 1), 0, 3, jnp.int32)
    num_inv = jax.random.randint(k_inv, (num_nodes, 1), 0, 3, jnp.int32)
    x = jnp.concatenate([node_type, num_inv], axis=1)            # [N, 2] int32

    out = node_encoder_forward(x, emb_weight)
    out = jax.block_until_ready(out)

    ref = _reference_forward(x, emb_weight)
    assert out.shape == (num_nodes, emb_dim + 1)
    assert jnp.allclose(out, ref, atol=1e-5, rtol=1e-5), "mismatch vs reference"

    print("KERNEL_OK")
</pallas_src>

<mosaic_0001>
module attributes {stable_mosaic.version = 11 : i64} {
  func.func @_node_encoder_kernel(%arg0: i32, %arg1: memref<136x2xi32, #tpu.memory_space<vmem>>, %arg2: memref<3x33xf32, #tpu.memory_space<vmem>>, %arg3: memref<136x33xf32, #tpu.memory_space<vmem>>) attributes {dimension_semantics = [#tpu.dimension_semantics<parallel>], iteration_bounds = array<i64: 1>, scalar_prefetch = 0 : i64, scratch_operands = 0 : i64, tpu.core_type = #tpu.core_type<tc>, window_params = [{transform_indices = @transform_0, window_bounds = array<i64: 136, 2>}, {pipeline_mode = #tpu.pipeline_mode<synchronous>, transform_indices = @transform_1, window_bounds = array<i64: 3, 33>}, {transform_indices = @transform_2, window_bounds = array<i64: 136, 33>}]} {
    %c0 = arith.constant 0 : index
    %c0_0 = arith.constant 0 : index
    %0 = vector.load %arg1[%c0, %c0_0] : memref<136x2xi32, #tpu.memory_space<vmem>>, vector<136x1xi32>
    %c0_1 = arith.constant 0 : index
    %c1 = arith.constant 1 : index
    %1 = vector.load %arg1[%c0_1, %c1] : memref<136x2xi32, #tpu.memory_space<vmem>>, vector<136x1xi32>
    %2 = arith.sitofp %1 : vector<136x1xi32> to vector<136x1xf32>
    %cst = arith.constant 0.000000e+00 : f32
    %3 = vector.broadcast %cst : f32 to vector<136x1xf32>
    %4 = arith.maximumf %2, %3 : vector<136x1xf32>
    %c0_2 = arith.constant 0 : index
    %c0_3 = arith.constant 0 : index
    %5 = vector.load %arg2[%c0_2, %c0_3] : memref<3x33xf32, #tpu.memory_space<vmem>>, vector<1x33xf32>
    %c1_4 = arith.constant 1 : index
    %c0_5 = arith.constant 0 : index
    %6 = vector.load %arg2[%c1_4, %c0_5] : memref<3x33xf32, #tpu.memory_space<vmem>>, vector<1x33xf32>
    %c2 = arith.constant 2 : index
    %c0_6 = arith.constant 0 : index
    %7 = vector.load %arg2[%c2, %c0_6] : memref<3x33xf32, #tpu.memory_space<vmem>>, vector<1x33xf32>
    %c0_i32 = arith.constant 0 : i32
    %8 = vector.broadcast %c0_i32 : i32 to vector<136x1xi32>
    %9 = arith.cmpi eq, %0, %8 : vector<136x1xi32>
    %c1_i32 = arith.constant 1 : i32
    %10 = vector.broadcast %c1_i32 : i32 to vector<136x1xi32>
    %11 = arith.cmpi eq, %0, %10 : vector<136x1xi32>
    %12 = vector.shape_cast %11 : vector<136x1xi1> to vector<136x1xi1>
    %13 = vector.broadcast %12 : vector<136x1xi1> to vector<136x33xi1>
    %14 = vector.shape_cast %6 : vector<1x33xf32> to vector<1x33xf32>
    %15 = vector.broadcast %14 : vector<1x33xf32> to vector<136x33xf32>
    %16 = vector.shape_cast %7 : vector<1x33xf32> to vector<1x33xf32>
    %17 = vector.broadcast %16 : vector<1x33xf32> to vector<136x33xf32>
    %18 = arith.select %13, %15, %17 : vector<136x33xi1>, vector<136x33xf32>
    %19 = vector.shape_cast %9 : vector<136x1xi1> to vector<136x1xi1>
    %20 = vector.broadcast %19 : vector<136x1xi1> to vector<136x33xi1>
    %21 = vector.shape_cast %5 : vector<1x33xf32> to vector<1x33xf32>
    %22 = vector.broadcast %21 : vector<1x33xf32> to vector<136x33xf32>
    %23 = arith.select %20, %22, %18 : vector<136x33xi1>, vector<136x33xf32>
    %24 = tpu.iota {dimensions = array<i32: 1>} : vector<1x33xi32>
    %c32_i32 = arith.constant 32 : i32
    %25 = vector.broadcast %c32_i32 : i32 to vector<1x33xi32>
    %26 = arith.cmpi eq, %24, %25 : vector<1x33xi32>
    %27 = vector.shape_cast %26 : vector<1x33xi1> to vector<1x33xi1>
    %28 = vector.broadcast %27 : vector<1x33xi1> to vector<136x33xi1>
    %29 = vector.shape_cast %4 : vector<136x1xf32> to vector<136x1xf32>
    %30 = vector.broadcast %29 : vector<136x1xf32> to vector<136x33xf32>
    %31 = arith.select %28, %30, %23 : vector<136x33xi1>, vector<136x33xf32>
    %c0_7 = arith.constant 0 : index
    %c0_8 = arith.constant 0 : index
    %32 = vector.load %arg3[%c0_7, %c0_8] : memref<136x33xf32, #tpu.memory_space<vmem>>, vector<136x33xf32>
    tpu.vector_store %arg3[%c0_7, %c0_8], %31 {strides = array<i32>} : memref<136x33xf32, #tpu.memory_space<vmem>>, vector<136x33xf32>,
    return
  }
  func.func @transform_0(%arg0: i32) -> (i32, i32) {
    %c0_i32 = arith.constant 0 : i32
    %c0_i32_0 = arith.constant 0 : i32
    return %arg0, %c0_i32 : i32, i32
  }
  func.func @transform_1(%arg0: i32) -> (i32, i32) {
    %c0_i32 = arith.constant 0 : i32
    %c0_i32_0 = arith.constant 0 : i32
    %c0_i32_1 = arith.constant 0 : i32
    return %c0_i32, %c0_i32_0 : i32, i32
  }
  func.func @transform_2(%arg0: i32) -> (i32, i32) {
    %c0_i32 = arith.constant 0 : i32
    %c0_i32_0 = arith.constant 0 : i32
    return %arg0, %c0_i32 : i32, i32
  }
}

</mosaic_0001>

<llo_original>
// kernel: tpu_custom_call.1
$region0: #{tpu_custom_call.1}
  #allocation0 [shape = 'u32[]', space=smem, size = 0x4, offset = 0x4, fixed_abs, tag = 'smem constant byte address 0x4 - core index']
  #allocation1 [shape = 'u32[72,128]{1,0:T(1,128)}', space=vmem, size = 0x9000, scoped, tag = 'internal scratch']
  %s0 = inlined_call_operand.vmem [shape: s32[130,2], index: 0, kind: input, shape index: {}]
  %s1 = inlined_call_operand.vmem [shape: f32[3,33], index: 1, kind: input, shape index: {}]
  %s2 = inlined_call_operand.vmem [shape: f32[130,33], index: 2, kind: output, shape index: {}]
  %s3 = sld [smem:[#allocation0]]
  $region18: #{tpu_custom_call.1} parent=0
    _
  %s5 = ssub.s32 1, %s3
  %s6 = scalar_select 0, %s5, %s3
  // Predicated region
  $region2: #{tpu_custom_call.1} parent=0 // pred_check
    _
  $region3: #{tpu_custom_call.1} parent=0 // pred_check_branch
    %8 = sbr.rel (0) target = $region5
  $region4: #{tpu_custom_call.1} parent=0 // pred_region
    _
  $region5: #{tpu_custom_call.1} parent=0 // pred_fallthru
    _
  // Predicated region
  $region6: #{tpu_custom_call.1} parent=0 // pred_check
    _
  $region7: #{tpu_custom_call.1} parent=0 // pred_check_branch
    %10 = sbr.rel (0) target = $region9
  $region8: #{tpu_custom_call.1} parent=0 // pred_region
    _
  $region9: #{tpu_custom_call.1} parent=0 // pred_fallthru
    _
  %v11 = vld [vmem:[%s0] sm:$0xff]
  %v12 = vld [vmem:[%s0 + $0x8] sm:$0xff]
  %v13 = vld [vmem:[%s0 + $0x10] sm:$0xff]
  %v14 = vld [vmem:[%s0 + $0x18] sm:$0xff]
  %v15 = vld [vmem:[%s0 + $0x20] sm:$0xff]
  %v16 = vld [vmem:[%s0 + $0x28] sm:$0xff]
  %v17 = vld [vmem:[%s0 + $0x30] sm:$0xff]
  %v18 = vld [vmem:[%s0 + $0x38] sm:$0xff]
  %v19 = vld [vmem:[%s0 + $0x40] sm:$0xff]
  %v20 = vld [vmem:[%s0 + $0x48] sm:$0xff]
  %v21 = vld [vmem:[%s0 + $0x50] sm:$0xff]
  %v22 = vld [vmem:[%s0 + $0x58] sm:$0xff]
  %v23 = vld [vmem:[%s0 + $0x60] sm:$0xff]
  %v24 = vld [vmem:[%s0 + $0x68] sm:$0xff]
  %v25 = vld [vmem:[%s0 + $0x70] sm:$0xff]
  %v26 = vld [vmem:[%s0 + $0x78] sm:$0xff]
  %v27 = vld [vmem:[%s0 + $0x80] sm:$0xff]
  %v28 = vcvt.s32.f32 %v11
  %v29 = vcvt.s32.f32 %v12
  %v30 = vcvt.s32.f32 %v13
  %v31 = vcvt.s32.f32 %v14
  %v32 = vcvt.s32.f32 %v15
  %v33 = vcvt.s32.f32 %v16
  %v34 = vcvt.s32.f32 %v17
  %v35 = vcvt.s32.f32 %v18
  %v36 = vcvt.s32.f32 %v19
  %v37 = vcvt.s32.f32 %v20
  %v38 = vcvt.s32.f32 %v21
  %v39 = vcvt.s32.f32 %v22
  %v40 = vcvt.s32.f32 %v23
  %v41 = vcvt.s32.f32 %v24
  %v42 = vcvt.s32.f32 %v25
  %v43 = vcvt.s32.f32 %v26
  %v44 = vcvt.s32.f32 %v27
  %v45 = vmax.f32 %v28, 0.0
  %v46 = vmax.f32 %v29, 0.0
  %v47 = vmax.f32 %v30, 0.0
  %v48 = vmax.f32 %v31, 0.0
  %v49 = vmax.f32 %v32, 0.0
  %v50 = vmax.f32 %v33, 0.0
  %v51 = vmax.f32 %v34, 0.0
  %v52 = vmax.f32 %v35, 0.0
  %v53 = vmax.f32 %v36, 0.0
  %v54 = vmax.f32 %v37, 0.0
  %v55 = vmax.f32 %v38, 0.0
  %v56 = vmax.f32 %v39, 0.0
  %v57 = vmax.f32 %v40, 0.0
  %v58 = vmax.f32 %v41, 0.0
  %v59 = vmax.f32 %v42, 0.0
  %v60 = vmax.f32 %v43, 0.0
  %v61 = vmax.f32 %v44, 0.0
  %v62 = vld [vmem:[%s1] sm:$0x1]
  %v63 = vld [vmem:[%s1 + $0x1] sm:$0x1]
  %v64 = vld [vmem:[%s1 + $0x2] sm:$0x1]
  %vm65 = vcmp.eq.s32.totalorder %v11, 0
  %vm66 = vcmp.eq.s32.totalorder %v12, 0
  %vm67 = vcmp.eq.s32.totalorder %v13, 0
  %vm68 = vcmp.eq.s32.totalorder %v14, 0
  %vm69 = vcmp.eq.s32.totalorder %v15, 0
  %vm70 = vcmp.eq.s32.totalorder %v16, 0
  %vm71 = vcmp.eq.s32.totalorder %v17, 0
  %vm72 = vcmp.eq.s32.totalorder %v18, 0
  %vm73 = vcmp.eq.s32.totalorder %v19, 0
  %vm74 = vcmp.eq.s32.totalorder %v20, 0
  %vm75 = vcmp.eq.s32.totalorder %v21, 0
  %vm76 = vcmp.eq.s32.totalorder %v22, 0
  %vm77 = vcmp.eq.s32.totalorder %v23, 0
  %vm78 = vcmp.eq.s32.totalorder %v24, 0
  %vm79 = vcmp.eq.s32.totalorder %v25, 0
  %vm80 = vcmp.eq.s32.totalorder %v26, 0
  %vm81 = vcmp.eq.s32.totalorder %v27, 0
  %vm82 = vcmp.eq.s32.totalorder %v11, 1
  %vm83 = vcmp.eq.s32.totalorder %v12, 1
  %vm84 = vcmp.eq.s32.totalorder %v13, 1
  %vm85 = vcmp.eq.s32.totalorder %v14, 1
  %vm86 = vcmp.eq.s32.totalorder %v15, 1
  %vm87 = vcmp.eq.s32.totalorder %v16, 1
  %vm88 = vcmp.eq.s32.totalorder %v17, 1
  %vm89 = vcmp.eq.s32.totalorder %v18, 1
  %vm90 = vcmp.eq.s32.totalorder %v19, 1
  %vm91 = vcmp.eq.s32.totalorder %v20, 1
  %vm92 = vcmp.eq.s32.totalorder %v21, 1
  %vm93 = vcmp.eq.s32.totalorder %v22, 1
  %vm94 = vcmp.eq.s32.totalorder %v23, 1
  %vm95 = vcmp.eq.s32.totalorder %v24, 1
  %vm96 = vcmp.eq.s32.totalorder %v25, 1
  %vm97 = vcmp.eq.s32.totalorder %v26, 1
  %vm98 = vcmp.eq.s32.totalorder %v27, 1
  %v99 = vsel %vm82, 1, 0
  %v100 = vsel %vm83, 1, 0
  %v101 = vsel %vm84, 1, 0
  %v102 = vsel %vm85, 1, 0
  %v103 = vsel %vm86, 1, 0
  %v104 = vsel %vm87, 1, 0
  %v105 = vsel %vm88, 1, 0
  %v106 = vsel %vm89, 1, 0
  %v107 = vsel %vm90, 1, 0
  %v108 = vsel %vm91, 1, 0
  %v109 = vsel %vm92, 1, 0
  %v110 = vsel %vm93, 1, 0
  %v111 = vsel %vm94, 1, 0
  %v112 = vsel %vm95, 1, 0
  %v113 = vsel %vm96, 1, 0
  %v114 = vsel %vm97, 1, 0
  %v115 = vsel %vm98, 1, 0
  %116 = vset.pattern.permute.xlu0 0
  %117 = vperm.xlu0 %116, %v99
  %v118 = vpop.permute.xlu0 %117
  %119 = vset.pattern.permute.xlu0 0
  %120 = vperm.xlu0 %119, %v100
  %v121 = vpop.permute.xlu0 %120
  %122 = vset.pattern.permute.xlu0 0
  %123 = vperm.xlu0 %122, %v101
  %v124 = vpop.permute.xlu0 %123
  %125 = vset.pattern.permute.xlu0 0
  %126 = vperm.xlu0 %125, %v102
  %v127 = vpop.permute.xlu0 %126
  %128 = vset.pattern.permute.xlu0 0
  %129 = vperm.xlu0 %128, %v103
  %v130 = vpop.permute.xlu0 %129
  %131 = vset.pattern.permute.xlu0 0
  %132 = vperm.xlu0 %131, %v104
  %v133 = vpop.permute.xlu0 %132
  %134 = vset.pattern.permute.xlu0 0
  %135 = vperm.xlu0 %134, %v105
  %v136 = vpop.permute.xlu0 %135
  %137 = vset.pattern.permute.xlu0 0
  %138 = vperm.xlu0 %137, %v106
  %v139 = vpop.permute.xlu0 %138
  %140 = vset.pattern.permute.xlu0 0
  %141 = vperm.xlu0 %140, %v107
  %v142 = vpop.permute.xlu0 %141
  %143 = vset.pattern.permute.xlu0 0
  %144 = vperm.xlu0 %143, %v108
  %v145 = vpop.permute.xlu0 %144
  %146 = vset.pattern.permute.xlu0 0
  %147 = vperm.xlu0 %146, %v109
  %v148 = vpop.permute.xlu0 %147
  %149 = vset.pattern.permute.xlu0 0
  %150 = vperm.xlu0 %149, %v110
  %v151 = vpop.permute.xlu0 %150
  %152 = vset.pattern.permute.xlu0 0
  %153 = vperm.xlu0 %152, %v111
  %v154 = vpop.permute.xlu0 %153
  %155 = vset.pattern.permute.xlu0 0
  %156 = vperm.xlu0 %155, %v112
  %v157 = vpop.permute.xlu0 %156
  %158 = vset.pattern.permute.xlu0 0
  %159 = vperm.xlu0 %158, %v113
  %v160 = vpop.permute.xlu0 %159
  %161 = vset.pattern.permute.xlu0 0
  %162 = vperm.xlu0 %161, %v114
  %v163 = vpop.permute.xlu0 %162
  %164 = vset.pattern.permute.xlu0 0
  %165 = vperm.xlu0 %164, %v115
  %v166 = vpop.permute.xlu0 %165
  %vm167 = vcmp.eq.s32.totalorder %v118, 1
  %vm168 = vcmp.eq.s32.totalorder %v121, 1
  %vm169 = vcmp.eq.s32.totalorder %v124, 1
  %vm170 = vcmp.eq.s32.totalorder %v127, 1
  %vm171 = vcmp.eq.s32.totalorder %v130, 1
  %vm172 = vcmp.eq.s32.totalorder %v133, 1
  %vm173 = vcmp.eq.s32.totalorder %v136, 1
  %vm174 = vcmp.eq.s32.totalorder %v139, 1
  %vm175 = vcmp.eq.s32.totalorder %v142, 1
  %vm176 = vcmp.eq.s32.totalorder %v145, 1
  %vm177 = vcmp.eq.s32.totalorder %v148, 1
  %vm178 = vcmp.eq.s32.totalorder %v151, 1
  %vm179 = vcmp.eq.s32.totalorder %v154, 1
  %vm180 = vcmp.eq.s32.totalorder %v157, 1
  %vm181 = vcmp.eq.s32.totalorder %v160, 1
  %vm182 = vcmp.eq.s32.totalorder %v163, 1
  %vm183 = vcmp.eq.s32.totalorder %v166, 1
  %v184 = vperm.slane %v63, 0
  %v185 = vperm.slane %v64, 0
  %v186 = vsel %vm167, %v184, %v185
  %v187 = vsel %vm168, %v184, %v185
  %v188 = vsel %vm169, %v184, %v185
  %v189 = vsel %vm170, %v184, %v185
  %v190 = vsel %vm171, %v184, %v185
  %v191 = vsel %vm172, %v184, %v185
  %v192 = vsel %vm173, %v184, %v185
  %v193 = vsel %vm174, %v184, %v185
  %v194 = vsel %vm175, %v184, %v185
  %v195 = vsel %vm176, %v184, %v185
  %v196 = vsel %vm177, %v184, %v185
  %v197 = vsel %vm178, %v184, %v185
  %v198 = vsel %vm179, %v184, %v185
  %v199 = vsel %vm180, %v184, %v185
  %v200 = vsel %vm181, %v184, %v185
  %v201 = vsel %vm182, %v184, %v185
  %v202 = vsel %vm183, %v184, %v185
  %v203 = vsel %vm65, 1, 0
  %v204 = vsel %vm66, 1, 0
  %v205 = vsel %vm67, 1, 0
  %v206 = vsel %vm68, 1, 0
  %v207 = vsel %vm69, 1, 0
  %v208 = vsel %vm70, 1, 0
  %v209 = vsel %vm71, 1, 0
  %v210 = vsel %vm72, 1, 0
  %v211 = vsel %vm73, 1, 0
  %v212 = vsel %vm74, 1, 0
  %v213 = vsel %vm75, 1, 0
  %v214 = vsel %vm76, 1, 0
  %v215 = vsel %vm77, 1, 0
  %v216 = vsel %vm78, 1, 0
  %v217 = vsel %vm79, 1, 0
  %v218 = vsel %vm80, 1, 0
  %v219 = vsel %vm81, 1, 0
  %220 = vset.pattern.permute.xlu0 0
  %221 = vperm.xlu0 %220, %v203
  %v222 = vpop.permute.xlu0 %221
  %223 = vset.pattern.permute.xlu0 0
  %224 = vperm.xlu0 %223, %v204
  %v225 = vpop.permute.xlu0 %224
  %226 = vset.pattern.permute.xlu0 0
  %227 = vperm.xlu0 %226, %v205
  %v228 = vpop.permute.xlu0 %227
  %229 = vset.pattern.permute.xlu0 0
  %230 = vperm.xlu0 %229, %v206
  %v231 = vpop.permute.xlu0 %230
  %232 = vset.pattern.permute.xlu0 0
  %233 = vperm.xlu0 %232, %v207
  %v234 = vpop.permute.xlu0 %233
  %235 = vset.pattern.permute.xlu0 0
  %236 = vperm.xlu0 %235, %v208
  %v237 = vpop.permute.xlu0 %236
  %238 = vset.pattern.permute.xlu0 0
  %239 = vperm.xlu0 %238, %v209
  %v240 = vpop.permute.xlu0 %239
  %241 = vset.pattern.permute.xlu0 0
  %242 = vperm.xlu0 %241, %v210
  %v243 = vpop.permute.xlu0 %242
  %244 = vset.pattern.permute.xlu0 0
  %245 = vperm.xlu0 %244, %v211
  %v246 = vpop.permute.xlu0 %245
  %247 = vset.pattern.permute.xlu0 0
  %248 = vperm.xlu0 %247, %v212
  %v249 = vpop.permute.xlu0 %248
  %250 = vset.pattern.permute.xlu0 0
  %251 = vperm.xlu0 %250, %v213
  %v252 = vpop.permute.xlu0 %251
  %253 = vset.pattern.permute.xlu0 0
  %254 = vperm.xlu0 %253, %v214
  %v255 = vpop.permute.xlu0 %254
  %256 = vset.pattern.permute.xlu0 0
  %257 = vperm.xlu0 %256, %v215
  %v258 = vpop.permute.xlu0 %257
  %259 = vset.pattern.permute.xlu0 0
  %260 = vperm.xlu0 %259, %v216
  %v261 = vpop.permute.xlu0 %260
  %262 = vset.pattern.permute.xlu0 0
  %263 = vperm.xlu0 %262, %v217
  %v264 = vpop.permute.xlu0 %263
  %265 = vset.pattern.permute.xlu0 0
  %266 = vperm.xlu0 %265, %v218
  %v267 = vpop.permute.xlu0 %266
  %268 = vset.pattern.permute.xlu0 0
  %269 = vperm.xlu0 %268, %v219
  %v270 = vpop.permute.xlu0 %269
  %vm271 = vcmp.eq.s32.totalorder %v222, 1
  %vm272 = vcmp.eq.s32.totalorder %v225, 1
  %vm273 = vcmp.eq.s32.totalorder %v228, 1
  %vm274 = vcmp.eq.s32.totalorder %v231, 1
  %vm275 = vcmp.eq.s32.totalorder %v234, 1
  %vm276 = vcmp.eq.s32.totalorder %v237, 1
  %vm277 = vcmp.eq.s32.totalorder %v240, 1
  %vm278 = vcmp.eq.s32.totalorder %v243, 1
  %vm279 = vcmp.eq.s32.totalorder %v246, 1
  %vm280 = vcmp.eq.s32.totalorder %v249, 1
  %vm281 = vcmp.eq.s32.totalorder %v252, 1
  %vm282 = vcmp.eq.s32.totalorder %v255, 1
  %vm283 = vcmp.eq.s32.totalorder %v258, 1
  %vm284 = vcmp.eq.s32.totalorder %v261, 1
  %vm285 = vcmp.eq.s32.totalorder %v264, 1
  %vm286 = vcmp.eq.s32.totalorder %v267, 1
  %vm287 = vcmp.eq.s32.totalorder %v270, 1
  %v288 = vperm.slane %v62, 0
  %v289 = vsel %vm271, %v288, %v186
  %v290 = vsel %vm272, %v288, %v187
  %v291 = vsel %vm273, %v288, %v188
  %v292 = vsel %vm274, %v288, %v189
  %v293 = vsel %vm275, %v288, %v190
  %v294 = vsel %vm276, %v288, %v191
  %v295 = vsel %vm277, %v288, %v192
  %v296 = vsel %vm278, %v288, %v193
  %v297 = vsel %vm279, %v288, %v194
  %v298 = vsel %vm280, %v288, %v195
  %v299 = vsel %vm281, %v288, %v196
  %v300 = vsel %vm282, %v288, %v197
  %v301 = vsel %vm283, %v288, %v198
  %v302 = vsel %vm284, %v288, %v199
  %v303 = vsel %vm285, %v288, %v200
  %v304 = vsel %vm286, %v288, %v201
  %v305 = vsel %vm287, %v288, %v202
  %v306 = vlaneseq
  %v307 = vand.u32 %v306, 127
  %vm308 = vcmp.eq.s32.totalorder %v307, 32
  %v309 = vsel %vm308, 1, 0
  %vm310 = vcmp.eq.s32.totalorder %v309, 1
  %312 = vset.pattern.permute.xlu0 1
  %313 = vperm.xlu0 %312, %v45
  %v314 = vpop.permute.xlu0 %313
  %317 = vset.pattern.permute.xlu0 1
  %318 = vperm.xlu0 %317, %v46
  %v319 = vpop.permute.xlu0 %318
  %322 = vset.pattern.permute.xlu0 1
  %323 = vperm.xlu0 %322, %v47
  %v324 = vpop.permute.xlu0 %323
  %327 = vset.pattern.permute.xlu0 1
  %328 = vperm.xlu0 %327, %v48
  %v329 = vpop.permute.xlu0 %328
  %332 = vset.pattern.permute.xlu0 1
  %333 = vperm.xlu0 %332, %v49
  %v334 = vpop.permute.xlu0 %333
  %337 = vset.pattern.permute.xlu0 1
  %338 = vperm.xlu0 %337, %v50
  %v339 = vpop.permute.xlu0 %338
  %342 = vset.pattern.permute.xlu0 1
  %343 = vperm.xlu0 %342, %v51
  %v344 = vpop.permute.xlu0 %343
  %347 = vset.pattern.permute.xlu0 1
  %348 = vperm.xlu0 %347, %v52
  %v349 = vpop.permute.xlu0 %348
  %352 = vset.pattern.permute.xlu0 1
  %353 = vperm.xlu0 %352, %v53
  %v354 = vpop.permute.xlu0 %353
  %357 = vset.pattern.permute.xlu0 1
  %358 = vperm.xlu0 %357, %v54
  %v359 = vpop.permute.xlu0 %358
  %362 = vset.pattern.permute.xlu0 1
  %363 = vperm.xlu0 %362, %v55
  %v364 = vpop.permute.xlu0 %363
  %367 = vset.pattern.permute.xlu0 1
  %368 = vperm.xlu0 %367, %v56
  %v369 = vpop.permute.xlu0 %368
  %372 = vset.pattern.permute.xlu0 1
  %373 = vperm.xlu0 %372, %v57
  %v374 = vpop.permute.xlu0 %373
  %377 = vset.pattern.permute.xlu0 1
  %378 = vperm.xlu0 %377, %v58
  %v379 = vpop.permute.xlu0 %378
  %382 = vset.pattern.permute.xlu0 1
  %383 = vperm.xlu0 %382, %v59
  %v384 = vpop.permute.xlu0 %383
  %387 = vset.pattern.permute.xlu0 1
  %388 = vperm.xlu0 %387, %v60
  %v389 = vpop.permute.xlu0 %388
  %392 = vset.pattern.permute.xlu0 1
  %393 = vperm.xlu0 %392, %v61
  %v394 = vpop.permute.xlu0 %393
  %v396 = vsel %vm310, %v314, %v289
  %v397 = vsel %vm310, %v319, %v290
  %v398 = vsel %vm310, %v324, %v291
  %v399 = vsel %vm310, %v329, %v292
  %v400 = vsel %vm310, %v334, %v293
  %v401 = vsel %vm310, %v339, %v294
  %v402 = vsel %vm310, %v344, %v295
  %v403 = vsel %vm310, %v349, %v296
  %v404 = vsel %vm310, %v354, %v297
  %v405 = vsel %vm310, %v359, %v298
  %v406 = vsel %vm310, %v364, %v299
  %v407 = vsel %vm310, %v369, %v300
  %v408 = vsel %vm310, %v374, %v301
  %v409 = vsel %vm310, %v379, %v302
  %v410 = vsel %vm310, %v384, %v303
  %v411 = vsel %vm310, %v389, %v304
  %v412 = vsel %vm310, %v394, %v305
  %vm413 = vcmask 269312
  %414 = vst.msk [vmem:[%s2] sm:$0xff] %vm413, %v396
  %415 = vst.msk [vmem:[%s2 + $0x8] sm:$0xff] %vm413, %v397
  %416 = vst.msk [vmem:[%s2 + $0x10] sm:$0xff] %vm413, %v398
  %417 = vst.msk [vmem:[%s2 + $0x18] sm:$0xff] %vm413, %v399
  %418 = vst.msk [vmem:[%s2 + $0x20] sm:$0xff] %vm413, %v400
  %419 = vst.msk [vmem:[%s2 + $0x28] sm:$0xff] %vm413, %v401
  %420 = vst.msk [vmem:[%s2 + $0x30] sm:$0xff] %vm413, %v402
  %421 = vst.msk [vmem:[%s2 + $0x38] sm:$0xff] %vm413, %v403
  %422 = vst.msk [vmem:[%s2 + $0x40] sm:$0xff] %vm413, %v404
  %423 = vst.msk [vmem:[%s2 + $0x48] sm:$0xff] %vm413, %v405
  %424 = vst.msk [vmem:[%s2 + $0x50] sm:$0xff] %vm413, %v406
  %425 = vst.msk [vmem:[%s2 + $0x58] sm:$0xff] %vm413, %v407
  %426 = vst.msk [vmem:[%s2 + $0x60] sm:$0xff] %vm413, %v408
  %427 = vst.msk [vmem:[%s2 + $0x68] sm:$0xff] %vm413, %v409
  %428 = vst.msk [vmem:[%s2 + $0x70] sm:$0xff] %vm413, %v410
  %429 = vst.msk [vmem:[%s2 + $0x78] sm:$0xff] %vm413, %v411
  %430 = vst.msk [vmem:[%s2 + $0x80] sm:$0xff] %vm413, %v412
  // Predicated region
  $region10: #{tpu_custom_call.1} parent=0 // pred_check
    _
  $region11: #{tpu_custom_call.1} parent=0 // pred_check_branch
    %432 = sbr.rel (0) target = $region13
  $region12: #{tpu_custom_call.1} parent=0 // pred_region
    _
  $region13: #{tpu_custom_call.1} parent=0 // pred_fallthru
    _
  // Predicated region
  $region14: #{tpu_custom_call.1} parent=0 // pred_check
    _
  $region15: #{tpu_custom_call.1} parent=0 // pred_check_branch
    %434 = sbr.rel (0) target = $region17
  $region16: #{tpu_custom_call.1} parent=0 // pred_region
    _
  $region17: #{tpu_custom_call.1} parent=0 // pred_fallthru
    _

</llo_original>
